<compile_context>
chip_gen: v7x
topology: tpu7x:2x2x1
jax: 0.10.0
libtpu: 0.0.40
codegen_flags: <defaults>
</compile_context>

<pallas_src>
import math

import jax
import jax.numpy as jnp
from jax.experimental import pallas as pl
from jax.experimental.pallas import tpu as pltpu

_LANE = 128
_SUB = 8


def _cdiv(a, b):
    return -(-a // b)


def _vmem_limit_bytes() -> int:
    """Generation-aware scoped-VMEM limit (~half of physical capacity)."""
    try:
        cap = int(pltpu.get_tpu_info().vmem_capacity_bytes)
        return max(16 * 1024 * 1024, min(cap // 2, 64 * 1024 * 1024))
    except Exception:
        return 32 * 1024 * 1024       # safe default (fits every generation)


def _block_target_bytes(vmem_limit: int) -> int:
    # 2 streams (x in, out) x 2 pipeline buffers = 4 live blocks; 2x headroom.
    return max(1 << 20, vmem_limit // 8)


def _dense_rows(n: int, itemsize: int):
    """Sublane-tile height for a fully dense (rows, n // rows) per-sample view.

    Prefers the native packed sublane height for the dtype (8 for 32-bit,
    16 for 16-bit, 32 for 8-bit); returns None if n doesn't divide cleanly.
    """
    preferred = _SUB * max(1, 4 // itemsize)
    for r in (preferred, _SUB):
        if n % (r * _LANE) == 0:
            return r
    return None


# ----------------------------------------------------------------------------
# Kernels
# ----------------------------------------------------------------------------

def _drop_path_dense_kernel(scale_ref, x_ref, o_ref):
    """scale_ref: (1, 8, 128) f32 VMEM; x_ref/o_ref: (1, rows, TC) in x.dtype."""
    s = scale_ref[:, 0:1, 0:1].astype(o_ref.dtype)   # (1,1,1): 0 or 1/keep_prob
    o_ref[...] = x_ref[...] * s                      # native-dtype multiply


def _drop_path_ragged_kernel(scale_ref, x_ref, o_ref):
    """scale_ref: (TB, 128) f32 VMEM; x_ref/o_ref: (TB, TN) in x.dtype."""
    s = scale_ref[:, 0:1].astype(o_ref.dtype)        # (TB, 1)
    o_ref[...] = x_ref[...] * s


# ----------------------------------------------------------------------------
# Dense path: (B, rows, C) view, fully sublane/lane-dense blocks.
# ----------------------------------------------------------------------------

def _drop_path_dense(x, scale, rows, target_bytes, vmem_limit, donate):
    B = x.shape[0]
    n = math.prod(x.shape[1:])
    itemsize = jnp.dtype(x.dtype).itemsize
    C = n // rows                                    # multiple of 128 by construction
    x3 = x.reshape(B, rows, C)                       # free contiguous reshape

    # Lane tile: as wide as possible within the per-block byte budget.
    tc = (target_bytes // (rows * itemsize * _LANE)) * _LANE
    tc = max(_LANE, min(tc, C))
    nc = _cdiv(C, tc)
    # v7x megacore: guarantee >= 2 total grid steps when the tensor allows it.
    if B * nc < 2 and C >= 2 * _LANE:
        tc = max(_LANE, ((C // 2) // _LANE) * _LANE)
        nc = _cdiv(C, tc)
    grid = (B, nc)

    # Tiny per-sample scale slab (B * 4 KiB), rule-compliant (8, 128) blocks.
    scale3 = jnp.broadcast_to(scale[:, None, None], (B, _SUB, _LANE))

    extra = {}
    if donate:
        extra["input_output_aliases"] = {1: 0}       # x3 (input 1) -> output 0

    out = pl.pallas_call(
        _drop_path_dense_kernel,
        out_shape=jax.ShapeDtypeStruct((B, rows, C), x.dtype),
        grid_spec=pltpu.PrefetchScalarGridSpec(
            num_scalar_prefetch=0,
            grid=grid,
            in_specs=[
                pl.BlockSpec((1, _SUB, _LANE), lambda b, j: (b, 0, 0)),  # scale
                pl.BlockSpec((1, rows, tc), lambda b, j: (b, 0, j)),     # x
            ],
            out_specs=pl.BlockSpec((1, rows, tc), lambda b, j: (b, 0, j)),
        ),
        compiler_params=pltpu.CompilerParams(
            dimension_semantics=("parallel", "parallel"),
            vmem_limit_bytes=vmem_limit,
        ),
        cost_estimate=pl.CostEstimate(
            flops=B * n,
            transcendentals=0,
            bytes_accessed=2 * B * n * itemsize + B * _SUB * _LANE * 4,
        ),
        **extra,
    )(scale3, x3)
    return out.reshape(x.shape)


# ----------------------------------------------------------------------------
# Ragged fallback: pad-free 2-D (B, n) tiling with partial-block masking.
# ----------------------------------------------------------------------------

def _choose_tiles_ragged(B, n, itemsize, target_bytes):
    target_elems = max(_SUB * _LANE, target_bytes // itemsize)
    ncols = _cdiv(n, _LANE)                          # 128-lane groups per row
    row_elems = ncols * _LANE

    # Batch tile (sublane dim): must equal B or be a multiple of 8.
    if B % _SUB == 0 and B > _SUB:
        want_rows = max(1, target_elems // row_elems)
        tb = min(B, max(_SUB, (want_rows // _SUB) * _SUB))
    else:
        tb = B        # full-extent batch dim (may underfill sublanes; tail case)

    # Lane tile: a multiple of 128, or the full (possibly ragged) row.
    want_groups = max(1, target_elems // (tb * _LANE))
    if want_groups >= ncols:
        tn = n
    else:
        tn = want_groups * _LANE
    return tb, tn


def _drop_path_ragged(x, scale, target_bytes, vmem_limit, donate):
    B = x.shape[0]
    n = math.prod(x.shape[1:])
    itemsize = jnp.dtype(x.dtype).itemsize
    xf = x.reshape(B, n)
    scale2d = jnp.broadcast_to(scale[:, None], (B, _LANE))

    tb, tn = _choose_tiles_ragged(B, n, itemsize, target_bytes)
    grid = (_cdiv(B, tb), _cdiv(n, tn))

    extra = {}
    if donate:
        extra["input_output_aliases"] = {1: 0}

    out = pl.pallas_call(
        _drop_path_ragged_kernel,
        out_shape=jax.ShapeDtypeStruct((B, n), x.dtype),
        grid_spec=pltpu.PrefetchScalarGridSpec(
            num_scalar_prefetch=0,
            grid=grid,
            in_specs=[
                pl.BlockSpec((tb, _LANE), lambda i, j: (i, 0)),   # scale
                pl.BlockSpec((tb, tn), lambda i, j: (i, j)),      # x
            ],
            out_specs=pl.BlockSpec((tb, tn), lambda i, j: (i, j)),
        ),
        compiler_params=pltpu.CompilerParams(
            dimension_semantics=("parallel", "parallel"),
            vmem_limit_bytes=vmem_limit,
        ),
        cost_estimate=pl.CostEstimate(
            flops=B * n,
            transcendentals=0,
            bytes_accessed=2 * B * n * itemsize + B * _LANE * 4,
        ),
        **extra,
    )(scale2d, xf)
    return out.reshape(x.shape)


# ----------------------------------------------------------------------------
# Public API
# ----------------------------------------------------------------------------

def drop_path(x, drop_prob: float = 0.0, training: bool = False, *, key=None,
              donate: bool = False):
    """JAX/Pallas equivalent of the PyTorch drop_path."""
    if drop_prob == 0.0 or not training:
        return x
    assert key is not None, "need a PRNG key when training with drop_prob > 0"

    keep_prob = 1.0 - drop_prob
    B = x.shape[0]
    n = math.prod(x.shape[1:])
    itemsize = jnp.dtype(x.dtype).itemsize

    # Per-sample binary mask (B scalars) -- glue, done in plain JAX.
    u = jax.random.uniform(key, (B,), dtype=jnp.float32)
    scale = jnp.floor(keep_prob + u) / keep_prob        # 0 or 1/keep_prob, f32

    vmem_limit = _vmem_limit_bytes()
    target_bytes = _block_target_bytes(vmem_limit)

    rows = _dense_rows(n, itemsize)
    if rows is not None:
        return _drop_path_dense(x, scale, rows, target_bytes, vmem_limit, donate)
    # TODO(synk): ragged fallback can't guarantee sublane density when B is
    # small and not a multiple of 8 without padding; acceptable for tail shapes.
    return _drop_path_ragged(x, scale, target_bytes, vmem_limit, donate)


class DropPath:
    """Stateless stand-in for the nn.Module (no parameters)."""

    def __init__(self, drop_prob=None):
        self.drop_prob = drop_prob if drop_prob is not None else 0.0
        self.training = True

    def __call__(self, x, *, key=None):
        return drop_path(x, self.drop_prob, self.training, key=key)


def _reference(x, drop_prob, key):
    keep_prob = 1.0 - drop_prob
    u = jax.random.uniform(key, (x.shape[0],), dtype=jnp.float32)
    scale = (jnp.floor(keep_prob + u) / keep_prob).astype(x.dtype)
    return x * scale.reshape((-1,) + (1,) * (x.ndim - 1))


if __name__ == "__main__":
    root = jax.random.PRNGKey(0)
    k_x, k_mask, k_x2, k_x3 = jax.random.split(root, 4)

    drop_prob = 0.25
    module = DropPath(drop_prob)
    module.training = True

    # Dense path, f32 NCHW: n = 4*16*16 = 1024 -> (rows=8, C=128) per sample.
    x = jax.random.normal(k_x, (2, 4, 16, 16), dtype=jnp.float32)
    y = jax.block_until_ready(module(x, key=k_mask))
    y_ref = _reference(x, drop_prob, k_mask)
    assert jnp.allclose(y, y_ref, atol=1e-6, rtol=1e-6)

    # Dense path, bf16: n = 8*16*16 = 2048 -> (rows=16, C=128) per sample.
    xb = jax.random.normal(k_x3, (2, 8, 16, 16), dtype=jnp.bfloat16)
    yb = jax.block_until_ready(module(xb, key=k_mask))
    yb_ref = _reference(xb, drop_prob, k_mask)
    assert jnp.allclose(yb.astype(jnp.float32), yb_ref.astype(jnp.float32),
                        atol=1e-2, rtol=1e-2)

    # Ragged fallback: n = 3*5*7 = 105 (not a multiple of 128), partial blocks.
    x2 = jax.random.normal(k_x2, (2, 3, 5, 7), dtype=jnp.float32)
    y2 = jax.block_until_ready(module(x2, key=k_mask))
    y2_ref = _reference(x2, drop_prob, k_mask)
    assert jnp.allclose(y2, y2_ref, atol=1e-6, rtol=1e-6)

    # Eval mode / drop_prob=0 short-circuits to identity (matches PyTorch).
    module.training = False
    y_eval = jax.block_until_ready(module(x, key=k_mask))
    assert jnp.array_equal(y_eval, x)

    print("KERNEL_OK")
</pallas_src>

<mosaic_0001>
module attributes {stable_mosaic.version = 11 : i64} {
  func.func @_drop_path_dense_kernel(%arg0: i32, %arg1: i32, %arg2: memref<1x8x128xf32, #tpu.memory_space<vmem>>, %arg3: memref<1x8x128xf32, #tpu.memory_space<vmem>>, %arg4: memref<1x8x128xf32, #tpu.memory_space<vmem>>) attributes {dimension_semantics = [#tpu.dimension_semantics<parallel>, #tpu.dimension_semantics<parallel>], iteration_bounds = array<i64: 2, 1>, scalar_prefetch = 0 : i64, scratch_operands = 0 : i64, tpu.core_type = #tpu.core_type<tc>, window_params = [{transform_indices = @transform_0, window_bounds = array<i64: 1, 8, 128>}, {transform_indices = @transform_1, window_bounds = array<i64: 1, 8, 128>}, {transform_indices = @transform_2, window_bounds = array<i64: 1, 8, 128>}]} {
    %c0 = arith.constant 0 : index
    %c0_0 = arith.constant 0 : index
    %c0_1 = arith.constant 0 : index
    %0 = vector.load %arg2[%c0, %c0_0, %c0_1] : memref<1x8x128xf32, #tpu.memory_space<vmem>>, vector<1x1x1xf32>
    %c0_2 = arith.constant 0 : index
    %c0_3 = arith.constant 0 : index
    %c0_4 = arith.constant 0 : index
    %1 = vector.load %arg3[%c0_2, %c0_3, %c0_4] : memref<1x8x128xf32, #tpu.memory_space<vmem>>, vector<1x8x128xf32>
    %2 = vector.broadcast %0 : vector<1x1x1xf32> to vector<1x8x128xf32>
    %3 = arith.mulf %1, %2 : vector<1x8x128xf32>
    %c0_5 = arith.constant 0 : index
    %c0_6 = arith.constant 0 : index
    %c0_7 = arith.constant 0 : index
    %4 = vector.load %arg4[%c0_5, %c0_6, %c0_7] : memref<1x8x128xf32, #tpu.memory_space<vmem>>, vector<1x8x128xf32>
    tpu.vector_store %arg4[%c0_5, %c0_6, %c0_7], %3 {strides = array<i32>} : memref<1x8x128xf32, #tpu.memory_space<vmem>>, vector<1x8x128xf32>,
    return
  }
  func.func @transform_0(%arg0: i32, %arg1: i32) -> (i32, i32, i32) {
    %c0_i32 = arith.constant 0 : i32
    %c0_i32_0 = arith.constant 0 : i32
    %c0_i32_1 = arith.constant 0 : i32
    return %arg0, %c0_i32, %c0_i32_0 : i32, i32, i32
  }
  func.func @transform_1(%arg0: i32, %arg1: i32) -> (i32, i32, i32) {
    %c0_i32 = arith.constant 0 : i32
    %c0_i32_0 = arith.constant 0 : i32
    return %arg0, %c0_i32, %arg1 : i32, i32, i32
  }
  func.func @transform_2(%arg0: i32, %arg1: i32) -> (i32, i32, i32) {
    %c0_i32 = arith.constant 0 : i32
    %c0_i32_0 = arith.constant 0 : i32
    return %arg0, %c0_i32, %arg1 : i32, i32, i32
  }
}

</mosaic_0001>

<llo_original>
// kernel: tpu_custom_call.1
$region0: #{tpu_custom_call.1}
  #allocation0 [shape = 'u32[]', space=smem, size = 0x4, offset = 0x4, fixed_abs, tag = 'smem constant byte address 0x4 - core index']
  #allocation1 [shape = 'u32[144,128]{1,0:T(1,128)}', space=vmem, size = 0x12000, scoped, tag = 'internal scratch']
  %s0 = inlined_call_operand.hbm [shape: f32[2,8,128], index: 0, kind: input, shape index: {}]
  %s1 = inlined_call_operand.hbm [shape: f32[2,8,128], index: 1, kind: input, shape index: {}]
  %s2 = inlined_call_operand.hbm [shape: f32[2,8,128], index: 2, kind: output, shape index: {}]
  %s3 = sld [smem:[#allocation0]]
  $region49: #{tpu_custom_call.1} parent=0
    _
  %s5 = ssub.s32 1, %s3
  %s6 = scalar_select 0, %s5, %s3
  $region1: #{tpu_custom_call.1} parent=0
    #allocation2 [shape = 'u8[8192]{0}', space=vmem, size = 0x2000, scoped, tag = 'input window, operand 0']
    #allocation3 [shape = 's32[2]{0}', space=sflag, size = 0x8, scoped, tag = 'scoped memory for tpu_custom_call.1']
    #allocation4 [shape = 's32[2]{0}', space=sflag, size = 0x8, scoped, tag = 'scoped memory for tpu_custom_call.1']
    #allocation5 [shape = 'u8[8192]{0}', space=vmem, size = 0x2000, scoped, tag = 'input window, operand 1']
    #allocation6 [shape = 's32[2]{0}', space=sflag, size = 0x8, scoped, tag = 'scoped memory for tpu_custom_call.1']
    #allocation7 [shape = 'u8[8192]{0}', space=vmem, size = 0x2000, scoped, tag = 'output window, operand 0']
    %7 = vsyncpa [#allocation3], 0
    %s8 = scalar_lea.sflag [#allocation3], 1
    %9 = vsyncpa %s8, 0
    %10 = vsyncpa [#allocation6], 0
    %s11 = scalar_lea.sflag [#allocation6], 1
    %12 = vsyncpa %s11, 0
    %13 = vsyncpa [#allocation4], 0
    %s14 = scalar_lea.sflag [#allocation4], 1
    %15 = vsyncpa %s14, 0
    loop: start=0, step=1, limit=4
    $region2: #{tpu_custom_call.1} parent=1 // loop_pre_header
      _
    $region3: #{tpu_custom_call.1} parent=1 // loop_header
      %s17 = sphi 0, %s21
      %p18 = scmp.ge.s32.totalorder %s17, 4
      %s24 = sphi 0, %s36
      %s25 = sphi 0, %s32
      %s26 = sphi 0, %s24
      %s27 = sphi 0, %s25
      %s28 = sphi 0, %s26
      %s29 = sphi 0, %s27
      %s39 = sphi 0, %s41
      %s42 = sphi 0, %s39
      %s43 = sphi 0, %s42
      %s59 = sphi 0, %s43
      %s67 = sphi 0, %s69
      %s70 = sphi 0, %s67
      %s71 = sphi 0, %s70
      %s87 = sphi 0, %s71
      %s95 = sphi 0, %s97
      %s98 = sphi 0, %s95
      %s99 = sphi 0, %s98
      %s115 = sphi 0, %s99
    $region4: #{tpu_custom_call.1} parent=1 // loop_header_branch
      %20 = sbr.rel (%p18) target = $region8
    $region5: #{tpu_custom_call.1} parent=1 // loop_body
      %s22 = ssub.s32 %s17, 1
      %s23 = ssub.s32 %s17, 2
      %s30 = sadd.s32 1, %s25
      %p31 = scmp.ge.s32.totalorder %s30, 1
      %s32 = scalar_select %p31, 0, %s30
      %s33 = sadd.s32 1, %s24
      %s34 = scalar_select %p31, %s33, %s24
      %p35 = scmp.ge.s32.totalorder %s34, 2
      %s36 = scalar_select %p35, 0, %s34
      %s37 = ssub.s32 %s24, %s36
      %p38 = scmp.eq.s32.totalorder %s37, 0
      %s40 = sadd.s32 %s39, 1
      %s41 = scalar_select %p38, %s39, %s40
      %p44 = pneg %p38
      %p45 = scmp.eq.s32.totalorder %s17, 1
      %p46 = por %p44, %p45
      %p47 = scmp.ne.s32.totalorder %s39, %s42
      %p48 = scmp.eq.s32.totalorder %s17, 0
      %p49 = por %p47, %p48
      %p50 = scmp.ne.s32.totalorder %s39, %s42
      %p51 = scmp.eq.s32.totalorder %s22, 1
      %p52 = por %p50, %p51
      %p53 = scmp.ne.s32.totalorder %s42, %s43
      %p54 = scmp.eq.s32.totalorder %s22, 0
      %p55 = por %p53, %p54
      %p56 = scmp.ne.s32.totalorder %s42, %s43
      %p57 = scmp.eq.s32.totalorder %s23, 1
      %p58 = por %p56, %p57
      %p60 = scmp.ne.s32.totalorder %s43, %s59
      %p61 = scmp.eq.s32.totalorder %s23, 0
      %p62 = por %p60, %p61
      %s63 = ssub.s32 %s24, %s36
      %s64 = ssub.s32 %s25, %s32
      %s65 = sor.u32 %s63, %s64
      %p66 = scmp.eq.s32.totalorder %s65, 0
      %s68 = sadd.s32 %s67, 1
      %s69 = scalar_select %p66, %s67, %s68
      %p72 = pneg %p66
      %p73 = scmp.eq.s32.totalorder %s17, 1
      %p74 = por %p72, %p73
      %p75 = scmp.ne.s32.totalorder %s67, %s70
      %p76 = scmp.eq.s32.totalorder %s17, 0
      %p77 = por %p75, %p76
      %p78 = scmp.ne.s32.totalorder %s67, %s70
      %p79 = scmp.eq.s32.totalorder %s22, 1
      %p80 = por %p78, %p79
      %p81 = scmp.ne.s32.totalorder %s70, %s71
      %p82 = scmp.eq.s32.totalorder %s22, 0
      %p83 = por %p81, %p82
      %p84 = scmp.ne.s32.totalorder %s70, %s71
      %p85 = scmp.eq.s32.totalorder %s23, 1
      %p86 = por %p84, %p85
      %p88 = scmp.ne.s32.totalorder %s71, %s87
      %p89 = scmp.eq.s32.totalorder %s23, 0
      %p90 = por %p88, %p89
      %s91 = ssub.s32 %s24, %s36
      %s92 = ssub.s32 %s25, %s32
      %s93 = sor.u32 %s91, %s92
      %p94 = scmp.eq.s32.totalorder %s93, 0
      %s96 = sadd.s32 %s95, 1
      %s97 = scalar_select %p94, %s95, %s96
      %p100 = pneg %p94
      %p101 = scmp.eq.s32.totalorder %s17, 1
      %p102 = por %p100, %p101
      %p103 = scmp.ne.s32.totalorder %s95, %s98
      %p104 = scmp.eq.s32.totalorder %s17, 0
      %p105 = por %p103, %p104
      %p106 = scmp.ne.s32.totalorder %s95, %s98
      %p107 = scmp.eq.s32.totalorder %s22, 1
      %p108 = por %p106, %p107
      %p109 = scmp.ne.s32.totalorder %s98, %s99
      %p110 = scmp.eq.s32.totalorder %s22, 0
      %p111 = por %p109, %p110
      %p112 = scmp.ne.s32.totalorder %s98, %s99
      %p113 = scmp.eq.s32.totalorder %s23, 1
      %p114 = por %p112, %p113
      %p116 = scmp.ne.s32.totalorder %s99, %s115
      %p117 = scmp.eq.s32.totalorder %s23, 0
      %p118 = por %p116, %p117
      %p119 = scmp.le.s32.totalorder 1, %s17
      %p120 = scmp.lt.s32.totalorder %s17, 3
      %p121 = pnand %p119, %p120
      %p122 = pneg %p121
      // Predicated region
      $region9: #{tpu_custom_call.1} parent=5 // pred_check
        _
      $region10: #{tpu_custom_call.1} parent=5 // pred_check_branch
        %124 = sbr.rel (%p121) target = $region12
      $region11: #{tpu_custom_call.1} parent=5 // pred_region
        %s125 = ssub.s32 %s17, 1
      $region12: #{tpu_custom_call.1} parent=5 // pred_fallthru
        _
      %p126 = scmp.lt.s32.totalorder %s17, 2
      // Predicated region
      $region13: #{tpu_custom_call.1} parent=5 // pred_check
        %p127 = pneg %p126
      $region14: #{tpu_custom_call.1} parent=5 // pred_check_branch
        %129 = sbr.rel (%p127) target = $region16
      $region15: #{tpu_custom_call.1} parent=5 // pred_region
        // Predicated region
        $region17: #{tpu_custom_call.1} parent=15 // pred_check
          %p130 = pneg %p49
        $region18: #{tpu_custom_call.1} parent=15 // pred_check_branch
          %132 = sbr.rel (%p130) target = $region20
        $region19: #{tpu_custom_call.1} parent=15 // pred_region
          %s133 = sand.u32 %s39, 1
          %s134 = scalar_lea.sflag [#allocation3], %s133
          %s135 = sand.u32 %s39, 1
          %s136 = smul.addr %s135, 8
          %s137 = scalar_lea.vmem [#allocation2], %s136
          %s139 = ssub.s32 128, 128
          %140 = vsyncadd %s134, %s139
          %s141 = smul.addr %s24, 128
          %s142 = scalar_lea.hbm %s0, %s141
          %s144 = sshll.u32 %s137, 4
          %s145 = int_to_ptr.vmem [resolvable:$true] %s144
          %147 = dma.hbm_to_vmem [thread:$0]  %s142, 128, %s145, %s134
        $region20: #{tpu_custom_call.1} parent=15 // pred_fallthru
          _
        // Predicated region
        $region21: #{tpu_custom_call.1} parent=15 // pred_check
          %p148 = pneg %p77
        $region22: #{tpu_custom_call.1} parent=15 // pred_check_branch
          %150 = sbr.rel (%p148) target = $region24
        $region23: #{tpu_custom_call.1} parent=15 // pred_region
          %s151 = sand.u32 %s67, 1
          %s152 = scalar_lea.sflag [#allocation6], %s151
          %s153 = sand.u32 %s67, 1
          %s154 = smul.addr %s153, 8
          %s155 = scalar_lea.vmem [#allocation5], %s154
          %s157 = ssub.s32 128, 128
          %158 = vsyncadd %s152, %s157
          %s159 = sadd.s32 %s25, %s24
          %s160 = smul.addr %s159, 128
          %s161 = scalar_lea.hbm %s1, %s160
          %s163 = sshll.u32 %s155, 4
          %s164 = int_to_ptr.vmem [resolvable:$true] %s163
          %166 = dma.hbm_to_vmem [thread:$0]  %s161, 128, %s164, %s152
        $region24: #{tpu_custom_call.1} parent=15 // pred_fallthru
          _
      $region16: #{tpu_custom_call.1} parent=5 // pred_fallthru
        _
      %p167 = scmp.le.s32.totalorder 1, %s17
      %p168 = scmp.lt.s32.totalorder %s17, 3
      %p169 = pnand %p167, %p168
      %p170 = pneg %p169
      // Predicated region
      $region25: #{tpu_custom_call.1} parent=5 // pred_check
        _
      $region26: #{tpu_custom_call.1} parent=5 // pred_check_branch
        %172 = sbr.rel (%p169) target = $region28
      $region27: #{tpu_custom_call.1} parent=5 // pred_region
        %s173 = ssub.s32 %s17, 1
        %s174 = sand.u32 %s42, 1
        %s175 = scalar_lea.sflag [#allocation3], %s174
        %s176 = sand.u32 %s42, 1
        %s177 = smul.addr %s176, 8
        %s178 = scalar_lea.vmem [#allocation2], %s177
        // Predicated region
        $region29: #{tpu_custom_call.1} parent=27 // pred_check
          %p179 = pneg %p55
        $region30: #{tpu_custom_call.1} parent=27 // pred_check_branch
          %181 = sbr.rel (%p179) target = $region32
        $region31: #{tpu_custom_call.1} parent=27 // pred_region
          %182 = dma.done %s175, 128
        $region32: #{tpu_custom_call.1} parent=27 // pred_fallthru
          _
        %s183 = sand.u32 %s70, 1
        %s184 = scalar_lea.sflag [#allocation6], %s183
        %s185 = sand.u32 %s70, 1
        %s186 = smul.addr %s185, 8
        %s187 = scalar_lea.vmem [#allocation5], %s186
        // Predicated region
        $region33: #{tpu_custom_call.1} parent=27 // pred_check
          %p188 = pneg %p83
        $region34: #{tpu_custom_call.1} parent=27 // pred_check_branch
          %190 = sbr.rel (%p188) target = $region36
        $region35: #{tpu_custom_call.1} parent=27 // pred_region
          %191 = dma.done %s184, 128
        $region36: #{tpu_custom_call.1} parent=27 // pred_fallthru
          _
        %s192 = sand.u32 %s42, 1
        %s193 = scalar_lea.sflag [#allocation3], %s192
        %s194 = sand.u32 %s42, 1
        %s195 = smul.addr %s194, 8
        %s196 = scalar_lea.vmem [#allocation2], %s195
        %p197 = pneg %p55
        %p198 = pneg %p52
        %s199 = sand.u32 %s70, 1
        %s200 = scalar_lea.sflag [#allocation6], %s199
        %s201 = sand.u32 %s70, 1
        %s202 = smul.addr %s201, 8
        %s203 = scalar_lea.vmem [#allocation5], %s202
        %p204 = pneg %p83
        %p205 = pneg %p80
        %p206 = pneg %p111
        %p207 = pneg %p108
        %s208 = sand.u32 %s98, 1
        %s209 = scalar_lea.sflag [#allocation4], %s208
        %s210 = sand.u32 %s98, 1
        %s211 = smul.addr %s210, 8
        %s212 = scalar_lea.vmem [#allocation7], %s211
        %v213 = vld [vmem:[%s178] sm:$0x1]
        %v214 = vld [vmem:[%s187] sm:$0xff]
        %s216 = vtos %v213
        %v217 = vstv %s216
        %v219 = vmul.f32 %v214, %v217
        %220 = vst [vmem:[%s212] sm:$0xff] %v219
        %s221 = sand.u32 %s98, 1
        %s222 = scalar_lea.sflag [#allocation4], %s221
        %s223 = sand.u32 %s98, 1
        %s224 = smul.addr %s223, 8
        %s225 = scalar_lea.vmem [#allocation7], %s224
        // Predicated region
        $region37: #{tpu_custom_call.1} parent=27 // pred_check
          %p226 = pneg %p108
        $region38: #{tpu_custom_call.1} parent=27 // pred_check_branch
          %228 = sbr.rel (%p226) target = $region40
        $region39: #{tpu_custom_call.1} parent=27 // pred_region
          %s230 = ssub.s32 128, 128
          %231 = vsyncadd %s222, %s230
          %s232 = sadd.s32 %s27, %s26
          %s233 = smul.addr %s232, 128
          %s234 = scalar_lea.hbm %s2, %s233
          %s236 = sshll.u32 %s225, 4
          %s237 = int_to_ptr.vmem [resolvable:$true] %s236
          %239 = dma.vmem_to_hbm [thread:$0]  %s237, 128, %s234, %s222
        $region40: #{tpu_custom_call.1} parent=27 // pred_fallthru
          _
      $region28: #{tpu_custom_call.1} parent=5 // pred_fallthru
        _
      %p240 = scmp.le.s32.totalorder 2, %s17
      // Predicated region
      $region41: #{tpu_custom_call.1} parent=5 // pred_check
        %p241 = pneg %p240
      $region42: #{tpu_custom_call.1} parent=5 // pred_check_branch
        %243 = sbr.rel (%p241) target = $region44
      $region43: #{tpu_custom_call.1} parent=5 // pred_region
        %s244 = ssub.s32 %s17, 2
        // Predicated region
        $region45: #{tpu_custom_call.1} parent=43 // pred_check
          %p245 = pneg %p114
        $region46: #{tpu_custom_call.1} parent=43 // pred_check_branch
          %247 = sbr.rel (%p245) target = $region48
        $region47: #{tpu_custom_call.1} parent=43 // pred_region
          %s248 = sand.u32 %s99, 1
          %s249 = scalar_lea.sflag [#allocation4], %s248
          %s250 = sand.u32 %s99, 1
          %s251 = smul.addr %s250, 8
          %s252 = scalar_lea.vmem [#allocation7], %s251
          %253 = dma.done %s249, 128
        $region48: #{tpu_custom_call.1} parent=43 // pred_fallthru
          _
      $region44: #{tpu_custom_call.1} parent=5 // pred_fallthru
        _
    $region6: #{tpu_custom_call.1} parent=1 // loop_footer
      %s21 = sadd.s32 1, %s17
    $region7: #{tpu_custom_call.1} parent=1 // loop_footer_branch
      %16 = sbr.rel target = $region3
    $region8: #{tpu_custom_call.1} parent=1 // loop_exit
      _
    %254 = vsyncpa [#allocation3], 1
    %s255 = scalar_lea.sflag [#allocation3], 1
    %256 = vsyncpa %s255, 1
    %257 = vsyncpa [#allocation6], 1
    %s258 = scalar_lea.sflag [#allocation6], 1
    %259 = vsyncpa %s258, 1
    %260 = vsyncpa [#allocation4], 1
    %s261 = scalar_lea.sflag [#allocation4], 1
    %262 = vsyncpa %s261, 1

</llo_original>
